<compile_context>
chip_gen: v6e
topology: v6e:2x2x1
jax: 0.10.0
libtpu: 0.0.40
codegen_flags: <defaults>
</compile_context>

<pallas_src>
import math

import jax
import jax.numpy as jnp
from jax.experimental import pallas as pl
from jax.experimental.pallas import tpu as pltpu

N_STATES = 4
D_MODEL = 32


def arnet_kernel(x_ref, w_ref, b_ref, out_ref):
    # x_ref: (TB, 32) tile of flattened batch rows (bf16 or f32 in HBM).
    # w_ref: (96, 32) f32 slab = [w1; w2; w3 padded to 32 out-cols (zeros)].
    # b_ref: (8, 32)  f32 slab, rows 0/1/2 = b1 / b2 / b3 (padded with zeros).
    x = x_ref[...].astype(jnp.float32)
    b = b_ref[...]

    h = jnp.maximum(
        jnp.dot(x, w_ref[0:D_MODEL, :], preferred_element_type=jnp.float32)
        + b[0:1], 0.0)
    h = jnp.maximum(
        jnp.dot(h, w_ref[D_MODEL:2 * D_MODEL, :],
                preferred_element_type=jnp.float32) + b[1:2], 0.0)
    y = (jnp.dot(h, w_ref[2 * D_MODEL:3 * D_MODEL, :],
                 preferred_element_type=jnp.float32) + b[2:3])

    # Padded w3/b3 columns >= N_STATES are exactly zero; store only the true
    # 4-wide result. HBM-side writeback stays contiguous (block covers the full
    # last dim); only the VMEM-side store is masked.
    out_ref[...] = y[:, :N_STATES]


def _round_up(x, m):
    return ((x + m - 1) // m) * m


def pack_params(params):
    """Pack the 6 weight/bias tensors into two f32 slabs (call once, not per step)."""
    W = jnp.zeros((3 * D_MODEL, D_MODEL), jnp.float32)
    W = W.at[0:D_MODEL, :].set(params["w1"])
    W = W.at[D_MODEL:2 * D_MODEL, :].set(params["w2"])
    W = W.at[2 * D_MODEL:3 * D_MODEL, :N_STATES].set(params["w3"])

    B = jnp.zeros((8, D_MODEL), jnp.float32)
    B = B.at[0, :].set(params["b1"].reshape(-1))
    B = B.at[1, :].set(params["b2"].reshape(-1))
    B = B.at[2, :N_STATES].set(params["b3"].reshape(-1))
    return W, B


def arnet_forward(x, packed_params, *, row_tile=4096):
    """x: (..., D_MODEL) float32 or bfloat16 -> (..., N_STATES) float32.

    Pass x already in bf16 to halve the dominant (input-stream) HBM traffic;
    the kernel accumulates in f32 either way.
    """
    W, B = packed_params
    lead = x.shape[:-1]
    assert x.shape[-1] == D_MODEL
    R = int(math.prod(lead)) if lead else 1
    x2 = x.reshape(R, D_MODEL)  # keep caller's dtype (bf16 preferred)

    # Pad rows only to a multiple of 8 (sublane alignment); a ragged final
    # block w.r.t. TB is masked by Pallas edge-block handling.
    Rp = _round_up(max(R, 1), 8)
    if Rp != R:
        x2 = jnp.pad(x2, ((0, Rp - R), (0, 0)))

    TB = min(_round_up(row_tile, 8), Rp)
    grid = (pl.cdiv(Rp, TB),)

    flops = 2 * Rp * (D_MODEL * D_MODEL * 2 + D_MODEL * N_STATES)
    bytes_accessed = (Rp * D_MODEL * x2.dtype.itemsize
                      + Rp * N_STATES * 4
                      + int(W.size) * 4 + int(B.size) * 4)

    out = pl.pallas_call(
        arnet_kernel,
        out_shape=jax.ShapeDtypeStruct((Rp, N_STATES), jnp.float32),
        grid_spec=pltpu.PrefetchScalarGridSpec(
            num_scalar_prefetch=0,
            grid=grid,
            in_specs=[
                pl.BlockSpec((TB, D_MODEL), lambda i: (i, 0)),
                pl.BlockSpec(W.shape, lambda i: (0, 0)),  # resident, DMA'd once
                pl.BlockSpec(B.shape, lambda i: (0, 0)),  # resident, DMA'd once
            ],
            out_specs=pl.BlockSpec((TB, N_STATES), lambda i: (i, 0)),
        ),
        compiler_params=pltpu.CompilerParams(
            dimension_semantics=("parallel",),
        ),
        cost_estimate=pl.CostEstimate(
            flops=flops, transcendentals=0, bytes_accessed=bytes_accessed),
    )(x2, W, B)

    # When R is already a multiple of 8 this slice/reshape is a no-op view.
    return out[:R].reshape(*lead, N_STATES)


def init_params(key):
    """PyTorch-style Linear init: U(-1/sqrt(fan_in), 1/sqrt(fan_in)).
    Weights stored already transposed for y = x @ W + b."""
    def linear(k, fan_in, fan_out):
        kw, kb = jax.random.split(k)
        bound = 1.0 / math.sqrt(fan_in)
        w = jax.random.uniform(kw, (fan_in, fan_out), jnp.float32, -bound, bound)
        b = jax.random.uniform(kb, (1, fan_out), jnp.float32, -bound, bound)
        return w, b

    keys = jax.random.split(key, 3)
    p = {}
    p["w1"], p["b1"] = linear(keys[0], D_MODEL, D_MODEL)
    p["w2"], p["b2"] = linear(keys[1], D_MODEL, D_MODEL)
    p["w3"], p["b3"] = linear(keys[2], D_MODEL, N_STATES)
    return p


def _reference(x, p):
    h = jnp.maximum(x @ p["w1"] + p["b1"], 0.0)
    h = jnp.maximum(h @ p["w2"] + p["b2"], 0.0)
    return h @ p["w3"] + p["b3"]


if __name__ == "__main__":
    BATCH = 2
    key = jax.random.PRNGKey(0)
    k_x, k_p = jax.random.split(key)

    # ArNet consumes the transformer "extract": (batch, d_model=32) features.
    x = jax.random.normal(k_x, (BATCH, D_MODEL), jnp.float32)
    params = init_params(k_p)
    packed = pack_params(params)  # hoisted out of the per-call path

    # Stream the activations in bf16 (the recommended large-batch path).
    out = jax.block_until_ready(arnet_forward(x.astype(jnp.bfloat16), packed))
    assert out.shape == (BATCH, N_STATES)
    assert bool(jnp.all(jnp.isfinite(out)))

    expected = _reference(x, params)
    assert bool(jnp.allclose(out, expected, atol=2e-2, rtol=2e-2)), (
        float(jnp.max(jnp.abs(out - expected))))
    print("KERNEL_OK")
</pallas_src>

<mosaic_0001>
module attributes {stable_mosaic.version = 11 : i64} {
  func.func @arnet_kernel(%arg0: i32, %arg1: memref<8x32xbf16, #tpu.memory_space<vmem>>, %arg2: memref<96x32xf32, #tpu.memory_space<vmem>>, %arg3: memref<8x32xf32, #tpu.memory_space<vmem>>, %arg4: memref<8x4xf32, #tpu.memory_space<vmem>>) attributes {dimension_semantics = [#tpu.dimension_semantics<parallel>], iteration_bounds = array<i64: 1>, scalar_prefetch = 0 : i64, scratch_operands = 0 : i64, tpu.core_type = #tpu.core_type<tc>, window_params = [{transform_indices = @transform_0, window_bounds = array<i64: 8, 32>}, {pipeline_mode = #tpu.pipeline_mode<synchronous>, transform_indices = @transform_1, window_bounds = array<i64: 96, 32>}, {pipeline_mode = #tpu.pipeline_mode<synchronous>, transform_indices = @transform_2, window_bounds = array<i64: 8, 32>}, {transform_indices = @transform_3, window_bounds = array<i64: 8, 4>}]} {
    %c0 = arith.constant 0 : index
    %c0_0 = arith.constant 0 : index
    %0 = vector.load %arg1[%c0, %c0_0] : memref<8x32xbf16, #tpu.memory_space<vmem>>, vector<8x32xbf16>
    %1 = arith.extf %0 : vector<8x32xbf16> to vector<8x32xf32>
    %c0_1 = arith.constant 0 : index
    %c0_2 = arith.constant 0 : index
    %2 = vector.load %arg3[%c0_1, %c0_2] : memref<8x32xf32, #tpu.memory_space<vmem>>, vector<8x32xf32>
    %c0_3 = arith.constant 0 : index
    %c0_4 = arith.constant 0 : index
    %3 = vector.load %arg2[%c0_3, %c0_4] : memref<96x32xf32, #tpu.memory_space<vmem>>, vector<32x32xf32>
    %cst = arith.constant dense<0.000000e+00> : vector<8x32xf32>
    %4 = tpu.matmul %1, %3, %cst {dimension_numbers = #tpu.dot_dimension_numbers<[1], [0], [0], [1], [0, 0, 1, 1], [], []>} : vector<8x32xf32>, vector<32x32xf32>, vector<8x32xf32> -> vector<8x32xf32>
    %5 = vector.extract_strided_slice %2 {offsets = [0, 0], sizes = [1, 32], strides = [1, 1]} : vector<8x32xf32> to vector<1x32xf32>
    %6 = vector.broadcast %5 : vector<1x32xf32> to vector<8x32xf32>
    %7 = arith.addf %4, %6 : vector<8x32xf32>
    %cst_5 = arith.constant 0.000000e+00 : f32
    %8 = vector.broadcast %cst_5 : f32 to vector<8x32xf32>
    %9 = arith.maximumf %7, %8 : vector<8x32xf32>
    %c32 = arith.constant 32 : index
    %c0_6 = arith.constant 0 : index
    %10 = vector.load %arg2[%c32, %c0_6] : memref<96x32xf32, #tpu.memory_space<vmem>>, vector<32x32xf32>
    %cst_7 = arith.constant dense<0.000000e+00> : vector<8x32xf32>
    %11 = tpu.matmul %9, %10, %cst_7 {dimension_numbers = #tpu.dot_dimension_numbers<[1], [0], [0], [1], [0, 0, 1, 1], [], []>} : vector<8x32xf32>, vector<32x32xf32>, vector<8x32xf32> -> vector<8x32xf32>
    %12 = vector.extract_strided_slice %2 {offsets = [1, 0], sizes = [1, 32], strides = [1, 1]} : vector<8x32xf32> to vector<1x32xf32>
    %13 = vector.broadcast %12 : vector<1x32xf32> to vector<8x32xf32>
    %14 = arith.addf %11, %13 : vector<8x32xf32>
    %cst_8 = arith.constant 0.000000e+00 : f32
    %15 = vector.broadcast %cst_8 : f32 to vector<8x32xf32>
    %16 = arith.maximumf %14, %15 : vector<8x32xf32>
    %c64 = arith.constant 64 : index
    %c0_9 = arith.constant 0 : index
    %17 = vector.load %arg2[%c64, %c0_9] : memref<96x32xf32, #tpu.memory_space<vmem>>, vector<32x32xf32>
    %cst_10 = arith.constant dense<0.000000e+00> : vector<8x32xf32>
    %18 = tpu.matmul %16, %17, %cst_10 {dimension_numbers = #tpu.dot_dimension_numbers<[1], [0], [0], [1], [0, 0, 1, 1], [], []>} : vector<8x32xf32>, vector<32x32xf32>, vector<8x32xf32> -> vector<8x32xf32>
    %19 = vector.extract_strided_slice %2 {offsets = [2, 0], sizes = [1, 32], strides = [1, 1]} : vector<8x32xf32> to vector<1x32xf32>
    %20 = vector.broadcast %19 : vector<1x32xf32> to vector<8x32xf32>
    %21 = arith.addf %18, %20 : vector<8x32xf32>
    %22 = vector.extract_strided_slice %21 {offsets = [0, 0], sizes = [8, 4], strides = [1, 1]} : vector<8x32xf32> to vector<8x4xf32>
    %c0_11 = arith.constant 0 : index
    %c0_12 = arith.constant 0 : index
    %23 = vector.load %arg4[%c0_11, %c0_12] : memref<8x4xf32, #tpu.memory_space<vmem>>, vector<8x4xf32>
    tpu.vector_store %arg4[%c0_11, %c0_12], %22 {strides = array<i32>} : memref<8x4xf32, #tpu.memory_space<vmem>>, vector<8x4xf32>,
    return
  }
  func.func @transform_0(%arg0: i32) -> (i32, i32) {
    %c0_i32 = arith.constant 0 : i32
    %c0_i32_0 = arith.constant 0 : i32
    return %arg0, %c0_i32 : i32, i32
  }
  func.func @transform_1(%arg0: i32) -> (i32, i32) {
    %c0_i32 = arith.constant 0 : i32
    %c0_i32_0 = arith.constant 0 : i32
    %c0_i32_1 = arith.constant 0 : i32
    return %c0_i32, %c0_i32_0 : i32, i32
  }
  func.func @transform_2(%arg0: i32) -> (i32, i32) {
    %c0_i32 = arith.constant 0 : i32
    %c0_i32_0 = arith.constant 0 : i32
    %c0_i32_1 = arith.constant 0 : i32
    return %c0_i32, %c0_i32_0 : i32, i32
  }
  func.func @transform_3(%arg0: i32) -> (i32, i32) {
    %c0_i32 = arith.constant 0 : i32
    %c0_i32_0 = arith.constant 0 : i32
    return %arg0, %c0_i32 : i32, i32
  }
}

</mosaic_0001>

<llo_original>
// kernel: tpu_custom_call.1
$region0: #{tpu_custom_call.1}
  #allocation0 [shape = 'u32[]', space=smem, size = 0x4, offset = 0x4, fixed_abs, tag = 'smem constant byte address 0x4 - core index']
  #allocation1 [shape = 'u32[144,128]{1,0:T(1,128)}', space=vmem, size = 0x12000, scoped, tag = 'internal scratch']
  %s0 = inlined_call_operand.vmem [shape: bf16[8,32], index: 0, kind: input, shape index: {}]
  %s1 = inlined_call_operand.vmem [shape: f32[96,32], index: 1, kind: input, shape index: {}]
  %s2 = inlined_call_operand.vmem [shape: f32[8,32], index: 2, kind: input, shape index: {}]
  %s3 = inlined_call_operand.vmem [shape: f32[8,4], index: 3, kind: output, shape index: {}]
  %s4 = sld [smem:[#allocation0]]
  $region22: #{tpu_custom_call.1} parent=0
    _
  %s6 = ssub.s32 1, %s4
  %s7 = scalar_select 0, %s6, %s4
  // Predicated region
  $region2: #{tpu_custom_call.1} parent=0 // pred_check
    _
  $region3: #{tpu_custom_call.1} parent=0 // pred_check_branch
    %9 = sbr.rel (0) target = $region5
  $region4: #{tpu_custom_call.1} parent=0 // pred_region
    _
  $region5: #{tpu_custom_call.1} parent=0 // pred_fallthru
    _
  // Predicated region
  $region6: #{tpu_custom_call.1} parent=0 // pred_check
    _
  $region7: #{tpu_custom_call.1} parent=0 // pred_check_branch
    %11 = sbr.rel (0) target = $region9
  $region8: #{tpu_custom_call.1} parent=0 // pred_region
    _
  $region9: #{tpu_custom_call.1} parent=0 // pred_fallthru
    _
  // Predicated region
  $region10: #{tpu_custom_call.1} parent=0 // pred_check
    _
  $region11: #{tpu_custom_call.1} parent=0 // pred_check_branch
    %13 = sbr.rel (0) target = $region13
  $region12: #{tpu_custom_call.1} parent=0 // pred_region
    _
  $region13: #{tpu_custom_call.1} parent=0 // pred_fallthru
    _
  %v14 = vld [vmem:[%s0] sm:$0xf]
  %v15 = vunpack.c.l.bf16 %v14
  %v16 = vld [vmem:[%s2] sm:$0xff]
  %v17 = vld [vmem:[%s1] sm:$0xff]
  %v18 = vld [vmem:[%s1 + $0x8] sm:$0xff]
  %v19 = vld [vmem:[%s1 + $0x10] sm:$0xff]
  %v20 = vld [vmem:[%s1 + $0x18] sm:$0xff]
  %v21 = vlaneseq
  %v22 = vshrl.u32 %v21, 7
  %v23 = vsub.s32 0, %v22
  %v24 = vrot.slane %v16, %v23
  %vm25 = vcmask 261120
  %v27 = vsel %vm25, %v15, 0
  %29 = vmatprep.subr.mxu0 0.0
  %30 = vmatpush1.msra.mxu0 0.0
  %31 = vmatprep.subr.mxu0 0.0
  %32 = vmatpush1.msra.mxu0 0.0
  %33 = vmatprep.subr.mxu0 0.0
  %34 = vmatpush1.msra.mxu0 0.0
  %35 = vmatprep.subr.mxu0 0.0
  %36 = vmatpush1.msra.mxu0 0.0
  %37 = vmatprep.subr.mxu0 0.0
  %38 = vmatpush1.msra.mxu0 0.0
  %39 = vmatprep.subr.mxu0 0.0
  %40 = vmatpush1.msra.mxu0 0.0
  %41 = vmatprep.subr.mxu0 0.0
  %42 = vmatpush1.msra.mxu0 0.0
  %43 = vmatprep.subr.mxu0 0.0
  %44 = vmatpush1.msra.mxu0 0.0
  %45 = vmatprep.subr.mxu0 0.0
  %46 = vmatpush1.msra.mxu0 0.0
  %47 = vmatprep.subr.mxu0 0.0
  %48 = vmatpush1.msra.mxu0 0.0
  %49 = vmatprep.subr.mxu0 0.0
  %50 = vmatpush1.msra.mxu0 0.0
  %51 = vmatprep.subr.mxu0 0.0
  %52 = vmatpush1.msra.mxu0 0.0
  %53 = vmatprep.subr.mxu0 0.0
  %54 = vmatpush1.msra.mxu0 %v20
  %55 = vmatprep.subr.mxu0 0.0
  %56 = vmatpush1.msra.mxu0 %v19
  %57 = vmatprep.subr.mxu0 0.0
  %58 = vmatpush1.msra.mxu0 %v18
  %59 = vmatprep.subr.mxu0 0.0
  %60 = vmatpush1.msra.mxu0 %v17
  %61 = vmatprep.subr.mxu0 0.0
  %62 = vmatpush2.msra.mxu0 0.0
  %63 = vmatprep.subr.mxu0 0.0
  %64 = vmatpush2.msra.mxu0 0.0
  %65 = vmatprep.subr.mxu0 0.0
  %66 = vmatpush2.msra.mxu0 0.0
  %67 = vmatprep.subr.mxu0 0.0
  %68 = vmatpush2.msra.mxu0 0.0
  %69 = vmatprep.subr.mxu0 0.0
  %70 = vmatpush2.msra.mxu0 0.0
  %71 = vmatprep.subr.mxu0 0.0
  %72 = vmatpush2.msra.mxu0 0.0
  %73 = vmatprep.subr.mxu0 0.0
  %74 = vmatpush2.msra.mxu0 0.0
  %75 = vmatprep.subr.mxu0 0.0
  %76 = vmatpush2.msra.mxu0 0.0
  %77 = vmatprep.subr.mxu0 0.0
  %78 = vmatpush2.msra.mxu0 0.0
  %79 = vmatprep.subr.mxu0 0.0
  %80 = vmatpush2.msra.mxu0 0.0
  %81 = vmatprep.subr.mxu0 0.0
  %82 = vmatpush2.msra.mxu0 0.0
  %83 = vmatprep.subr.mxu0 0.0
  %84 = vmatpush2.msra.mxu0 0.0
  %85 = vmatprep.subr.mxu0 0.0
  %86 = vmatpush2.msra.mxu0 0.0
  %87 = vmatprep.subr.mxu0 0.0
  %88 = vmatpush2.msra.mxu0 0.0
  %89 = vmatprep.subr.mxu0 0.0
  %90 = vmatpush2.msra.mxu0 0.0
  %91 = vmatprep.subr.mxu0 0.0
  %92 = vmatpush2.msra.mxu0 0.0
  %93 = vmatprep.mubr.f32.mxu0 0.0
  %94 = vmatmul.mubr.f32.gmra.mxu0 %v27
  %v95 = vpop.f32.mrf.mxu0
  %v96 = vadd.f32 %v24, %v95
  %v97 = vpop.f32.mrf.mxu0
  %98 = vdwg.mxu0
  %v99 = vmax.f32 %v96, 0.0
  %v100 = vld [vmem:[%s1 + $0x20] sm:$0xff]
  %v101 = vld [vmem:[%s1 + $0x28] sm:$0xff]
  %v102 = vld [vmem:[%s1 + $0x30] sm:$0xff]
  %v103 = vld [vmem:[%s1 + $0x38] sm:$0xff]
  %v104 = vlaneseq
  %v105 = vshrl.u32 %v104, 7
  %v106 = vsub.s32 1, %v105
  %v107 = vrot.slane %v16, %v106
  %v109 = vsel %vm25, %v99, 0
  %111 = vmatprep.subr.mxu0 0.0
  %112 = vmatpush1.msra.mxu0 0.0
  %113 = vmatprep.subr.mxu0 0.0
  %114 = vmatpush1.msra.mxu0 0.0
  %115 = vmatprep.subr.mxu0 0.0
  %116 = vmatpush1.msra.mxu0 0.0
  %117 = vmatprep.subr.mxu0 0.0
  %118 = vmatpush1.msra.mxu0 0.0
  %119 = vmatprep.subr.mxu0 0.0
  %120 = vmatpush1.msra.mxu0 0.0
  %121 = vmatprep.subr.mxu0 0.0
  %122 = vmatpush1.msra.mxu0 0.0
  %123 = vmatprep.subr.mxu0 0.0
  %124 = vmatpush1.msra.mxu0 0.0
  %125 = vmatprep.subr.mxu0 0.0
  %126 = vmatpush1.msra.mxu0 0.0
  %127 = vmatprep.subr.mxu0 0.0
  %128 = vmatpush1.msra.mxu0 0.0
  %129 = vmatprep.subr.mxu0 0.0
  %130 = vmatpush1.msra.mxu0 0.0
  %131 = vmatprep.subr.mxu0 0.0
  %132 = vmatpush1.msra.mxu0 0.0
  %133 = vmatprep.subr.mxu0 0.0
  %134 = vmatpush1.msra.mxu0 0.0
  %135 = vmatprep.subr.mxu0 0.0
  %136 = vmatpush1.msra.mxu0 %v103
  %137 = vmatprep.subr.mxu0 0.0
  %138 = vmatpush1.msra.mxu0 %v102
  %139 = vmatprep.subr.mxu0 0.0
  %140 = vmatpush1.msra.mxu0 %v101
  %141 = vmatprep.subr.mxu0 0.0
  %142 = vmatpush1.msra.mxu0 %v100
  %143 = vmatprep.subr.mxu0 0.0
  %144 = vmatpush2.msra.mxu0 0.0
  %145 = vmatprep.subr.mxu0 0.0
  %146 = vmatpush2.msra.mxu0 0.0
  %147 = vmatprep.subr.mxu0 0.0
  %148 = vmatpush2.msra.mxu0 0.0
  %149 = vmatprep.subr.mxu0 0.0
  %150 = vmatpush2.msra.mxu0 0.0
  %151 = vmatprep.subr.mxu0 0.0
  %152 = vmatpush2.msra.mxu0 0.0
  %153 = vmatprep.subr.mxu0 0.0
  %154 = vmatpush2.msra.mxu0 0.0
  %155 = vmatprep.subr.mxu0 0.0
  %156 = vmatpush2.msra.mxu0 0.0
  %157 = vmatprep.subr.mxu0 0.0
  %158 = vmatpush2.msra.mxu0 0.0
  %159 = vmatprep.subr.mxu0 0.0
  %160 = vmatpush2.msra.mxu0 0.0
  %161 = vmatprep.subr.mxu0 0.0
  %162 = vmatpush2.msra.mxu0 0.0
  %163 = vmatprep.subr.mxu0 0.0
  %164 = vmatpush2.msra.mxu0 0.0
  %165 = vmatprep.subr.mxu0 0.0
  %166 = vmatpush2.msra.mxu0 0.0
  %167 = vmatprep.subr.mxu0 0.0
  %168 = vmatpush2.msra.mxu0 0.0
  %169 = vmatprep.subr.mxu0 0.0
  %170 = vmatpush2.msra.mxu0 0.0
  %171 = vmatprep.subr.mxu0 0.0
  %172 = vmatpush2.msra.mxu0 0.0
  %173 = vmatprep.subr.mxu0 0.0
  %174 = vmatpush2.msra.mxu0 0.0
  %175 = vmatprep.mubr.f32.mxu0 0.0
  %176 = vmatmul.mubr.f32.gmra.mxu0 %v109
  %v177 = vpop.f32.mrf.mxu0
  %v178 = vadd.f32 %v107, %v177
  %v179 = vpop.f32.mrf.mxu0
  %180 = vdwg.mxu0
  %v181 = vmax.f32 %v178, 0.0
  %v182 = vld [vmem:[%s1 + $0x40] sm:$0xff]
  %v183 = vld [vmem:[%s1 + $0x48] sm:$0xff]
  %v184 = vld [vmem:[%s1 + $0x50] sm:$0xff]
  %v185 = vld [vmem:[%s1 + $0x58] sm:$0xff]
  %v186 = vlaneseq
  %v187 = vshrl.u32 %v186, 7
  %v188 = vsub.s32 2, %v187
  %v189 = vrot.slane %v16, %v188
  %v191 = vsel %vm25, %v181, 0
  %193 = vmatprep.subr.mxu0 0.0
  %194 = vmatpush1.msra.mxu0 0.0
  %195 = vmatprep.subr.mxu0 0.0
  %196 = vmatpush1.msra.mxu0 0.0
  %197 = vmatprep.subr.mxu0 0.0
  %198 = vmatpush1.msra.mxu0 0.0
  %199 = vmatprep.subr.mxu0 0.0
  %200 = vmatpush1.msra.mxu0 0.0
  %201 = vmatprep.subr.mxu0 0.0
  %202 = vmatpush1.msra.mxu0 0.0
  %203 = vmatprep.subr.mxu0 0.0
  %204 = vmatpush1.msra.mxu0 0.0
  %205 = vmatprep.subr.mxu0 0.0
  %206 = vmatpush1.msra.mxu0 0.0
  %207 = vmatprep.subr.mxu0 0.0
  %208 = vmatpush1.msra.mxu0 0.0
  %209 = vmatprep.subr.mxu0 0.0
  %210 = vmatpush1.msra.mxu0 0.0
  %211 = vmatprep.subr.mxu0 0.0
  %212 = vmatpush1.msra.mxu0 0.0
  %213 = vmatprep.subr.mxu0 0.0
  %214 = vmatpush1.msra.mxu0 0.0
  %215 = vmatprep.subr.mxu0 0.0
  %216 = vmatpush1.msra.mxu0 0.0
  %217 = vmatprep.subr.mxu0 0.0
  %218 = vmatpush1.msra.mxu0 %v185
  %219 = vmatprep.subr.mxu0 0.0
  %220 = vmatpush1.msra.mxu0 %v184
  %221 = vmatprep.subr.mxu0 0.0
  %222 = vmatpush1.msra.mxu0 %v183
  %223 = vmatprep.subr.mxu0 0.0
  %224 = vmatpush1.msra.mxu0 %v182
  %225 = vmatprep.subr.mxu0 0.0
  %226 = vmatpush2.msra.mxu0 0.0
  %227 = vmatprep.subr.mxu0 0.0
  %228 = vmatpush2.msra.mxu0 0.0
  %229 = vmatprep.subr.mxu0 0.0
  %230 = vmatpush2.msra.mxu0 0.0
  %231 = vmatprep.subr.mxu0 0.0
  %232 = vmatpush2.msra.mxu0 0.0
  %233 = vmatprep.subr.mxu0 0.0
  %234 = vmatpush2.msra.mxu0 0.0
  %235 = vmatprep.subr.mxu0 0.0
  %236 = vmatpush2.msra.mxu0 0.0
  %237 = vmatprep.subr.mxu0 0.0
  %238 = vmatpush2.msra.mxu0 0.0
  %239 = vmatprep.subr.mxu0 0.0
  %240 = vmatpush2.msra.mxu0 0.0
  %241 = vmatprep.subr.mxu0 0.0
  %242 = vmatpush2.msra.mxu0 0.0
  %243 = vmatprep.subr.mxu0 0.0
  %244 = vmatpush2.msra.mxu0 0.0
  %245 = vmatprep.subr.mxu0 0.0
  %246 = vmatpush2.msra.mxu0 0.0
  %247 = vmatprep.subr.mxu0 0.0
  %248 = vmatpush2.msra.mxu0 0.0
  %249 = vmatprep.subr.mxu0 0.0
  %250 = vmatpush2.msra.mxu0 0.0
  %251 = vmatprep.subr.mxu0 0.0
  %252 = vmatpush2.msra.mxu0 0.0
  %253 = vmatprep.subr.mxu0 0.0
  %254 = vmatpush2.msra.mxu0 0.0
  %255 = vmatprep.subr.mxu0 0.0
  %256 = vmatpush2.msra.mxu0 0.0
  %257 = vmatprep.mubr.f32.mxu0 0.0
  %258 = vmatmul.mubr.f32.gmra.mxu0 %v191
  %v259 = vpop.f32.mrf.mxu0
  %v260 = vadd.f32 %v189, %v259
  %v261 = vpop.f32.mrf.mxu0
  %262 = vdwg.mxu0
  %vm263 = vcmask 31744
  %264 = vst.msk [vmem:[%s3] sm:$0xff] %vm263, %v260
  // Predicated region
  $region14: #{tpu_custom_call.1} parent=0 // pred_check
    _
  $region15: #{tpu_custom_call.1} parent=0 // pred_check_branch
    %266 = sbr.rel (0) target = $region17
  $region16: #{tpu_custom_call.1} parent=0 // pred_region
    _
  $region17: #{tpu_custom_call.1} parent=0 // pred_fallthru
    _
  // Predicated region
  $region18: #{tpu_custom_call.1} parent=0 // pred_check
    _
  $region19: #{tpu_custom_call.1} parent=0 // pred_check_branch
    %268 = sbr.rel (0) target = $region21
  $region20: #{tpu_custom_call.1} parent=0 // pred_region
    _
  $region21: #{tpu_custom_call.1} parent=0 // pred_fallthru
    _

</llo_original>
